<compile_context>
chip_gen: v7x
topology: tpu7x:2x2x1
jax: 0.10.0
libtpu: 0.0.40
codegen_flags: <defaults>
</compile_context>

<pallas_src>
import functools

import jax
import jax.numpy as jnp
from jax.experimental import pallas as pl
from jax.experimental.pallas import tpu as pltpu

_LANE = 128


def _round_up(n, m):
    return (n + m - 1) // m * m


def _mlp_kernel(x_ref,
                w1_ref, b1_ref,
                w2_ref, b2_ref,
                w3_ref, b3_ref,
                w4_ref, b4_ref,
                wo_ref, bo_ref,
                out_ref,
                *, apply_softmax):
    """Fused: 4x (Linear -> ReLU) -> Linear [-> Softmax(dim=-1)]."""

    def dense_relu(h_bf16, w_ref, b_ref):
        acc = jnp.dot(h_bf16, w_ref[...], preferred_element_type=jnp.float32)
        acc = jnp.maximum(acc + b_ref[...], 0.0)          # f32 bias + ReLU (VPU)
        return acc.astype(jnp.bfloat16)                    # bf16 back into the MXU

    h = x_ref[...]                                         # bf16 (block_b, F)
    h = dense_relu(h, w1_ref, b1_ref)
    h = dense_relu(h, w2_ref, b2_ref)
    h = dense_relu(h, w3_ref, b3_ref)
    h = dense_relu(h, w4_ref, b4_ref)

    # Output layer on 128-lane-padded weights/bias (lane-dense store).
    logits = jnp.dot(h, wo_ref[...],
                     preferred_element_type=jnp.float32) + bo_ref[...]

    if apply_softmax:
        # Padded bias columns hold -1e30 => exp() underflows to 0, so the row
        # sum equals the sum over the real labels only.
        m = jnp.max(logits, axis=-1, keepdims=True)
        e = jnp.exp(logits - m)
        denom = jnp.sum(e, axis=-1, keepdims=True)
        out_ref[...] = (e * pl.reciprocal(denom, approx=True)).astype(out_ref.dtype)
    else:
        out_ref[...] = logits.astype(out_ref.dtype)


def mlp_large_forward(x, params, return_logits=False, block_b=256):
    """Fused MLPLarge forward.

    x:      (B, num_features) float32
    params: dict with w1..w4, b1..b4, wo, bo; weights as (in, out), bias (1, out)
            (equivalent to PyTorch's x @ W.T + b with its (out, in) layout).
    """
    batch, num_features = x.shape
    num_labels = params["wo"].shape[1]

    # ---- operand prep (bf16 matmul inputs, f32 biases) ---------------------
    x_bf = x.astype(jnp.bfloat16)
    w1 = params["w1"].astype(jnp.bfloat16)
    w2 = params["w2"].astype(jnp.bfloat16)
    w3 = params["w3"].astype(jnp.bfloat16)
    w4 = params["w4"].astype(jnp.bfloat16)
    b1 = params["b1"].astype(jnp.float32)
    b2 = params["b2"].astype(jnp.float32)
    b3 = params["b3"].astype(jnp.float32)
    b4 = params["b4"].astype(jnp.float32)

    # Lane-dense output: pad final layer to a multiple of 128 output columns.
    labels_p = _round_up(max(num_labels, 1), _LANE)
    wo = jnp.pad(params["wo"],
                 ((0, 0), (0, labels_p - num_labels))).astype(jnp.bfloat16)
    bo = jnp.pad(params["bo"].astype(jnp.float32),
                 ((0, 0), (0, labels_p - num_labels)),
                 constant_values=-1e30)

    # Batch (row) tiling; bf16 sublane packing -> keep the tile a multiple of 16.
    block_b = max(16, min(block_b, _round_up(batch, 16)))
    batch_p = _round_up(batch, block_b)
    if batch_p != batch:
        x_bf = jnp.pad(x_bf, ((0, batch_p - batch), (0, 0)))
    grid = (batch_p // block_b,)

    def _resident(arr):
        # Full-array block; block index never changes -> DMA'd once, stays
        # VMEM-resident across all grid steps.
        return pl.BlockSpec(arr.shape, lambda i: (0, 0))

    operands = (x_bf, w1, b1, w2, b2, w3, b3, w4, b4, wo, bo)

    in_specs = [pl.BlockSpec((block_b, num_features), lambda i: (i, 0))]
    in_specs += [_resident(a) for a in operands[1:]]
    out_specs = pl.BlockSpec((block_b, labels_p), lambda i: (i, 0))

    # Advisory cost estimate for XLA scheduling around the custom call.
    dims = [num_features, w1.shape[1], w2.shape[1], w3.shape[1], w4.shape[1], labels_p]
    flops = 2 * batch_p * sum(a * b for a, b in zip(dims[:-1], dims[1:]))
    bytes_accessed = sum(int(a.size) * a.dtype.itemsize for a in operands)
    bytes_accessed += batch_p * labels_p * 4
    cost = pl.CostEstimate(
        flops=flops,
        transcendentals=(batch_p * labels_p) if not return_logits else 0,
        bytes_accessed=bytes_accessed,
    )

    out = pl.pallas_call(
        functools.partial(_mlp_kernel, apply_softmax=not return_logits),
        out_shape=jax.ShapeDtypeStruct((batch_p, labels_p), jnp.float32),
        grid=grid,
        in_specs=in_specs,
        out_specs=out_specs,
        compiler_params=pltpu.CompilerParams(
            dimension_semantics=("parallel",),  # shards batch blocks across TCs on v7x
        ),
        cost_estimate=cost,
    )(*operands)

    # Drop batch padding and the padded label lanes.
    return out[:batch, :num_labels]


def init_params(key, num_features, num_labels, n_neurons):
    """Deterministic init mimicking torch.nn.Linear's U(-1/sqrt(in), 1/sqrt(in))."""
    assert len(n_neurons) == 4
    dims = [num_features] + list(n_neurons) + [num_labels]
    names = ["1", "2", "3", "4", "o"]
    params = {}
    for name, (d_in, d_out) in zip(names, zip(dims[:-1], dims[1:])):
        key, kw, kb = jax.random.split(key, 3)
        bound = 1.0 / jnp.sqrt(float(d_in))
        params[f"w{name}"] = jax.random.uniform(
            kw, (d_in, d_out), jnp.float32, minval=-bound, maxval=bound)
        params[f"b{name}"] = jax.random.uniform(
            kb, (1, d_out), jnp.float32, minval=-bound, maxval=bound)
    return params


def reference_forward(x, params, return_logits=False):
    """Plain-JAX f32 reference for correctness check."""
    h = jax.nn.relu(x @ params["w1"] + params["b1"])
    h = jax.nn.relu(h @ params["w2"] + params["b2"])
    h = jax.nn.relu(h @ params["w3"] + params["b3"])
    h = jax.nn.relu(h @ params["w4"] + params["b4"])
    logits = h @ params["wo"] + params["bo"]
    return logits if return_logits else jax.nn.softmax(logits, axis=-1)


if __name__ == "__main__":
    num_features = 32
    num_labels = 8
    n_neurons = (64, 64, 32, 32)
    batch = 8

    key = jax.random.PRNGKey(0)
    key, kx = jax.random.split(key)
    params = init_params(key, num_features, num_labels, n_neurons)
    x = jax.random.normal(kx, (batch, num_features), jnp.float32)

    # Softmax (default) path.
    out = jax.block_until_ready(mlp_large_forward(x, params))
    ref = reference_forward(x, params)
    assert out.shape == (batch, num_labels)
    # bf16 matmul inputs -> relax tolerance vs the f32 reference.
    assert jnp.allclose(out, ref, atol=3e-2, rtol=0), "softmax mismatch vs reference"
    assert jnp.allclose(jnp.sum(out, axis=-1), 1.0, atol=5e-3), "rows do not sum to 1"

    # return_logits path (skips softmax inside the kernel).
    logits = jax.block_until_ready(mlp_large_forward(x, params, return_logits=True))
    ref_logits = reference_forward(x, params, return_logits=True)
    assert logits.shape == (batch, num_labels)
    assert jnp.allclose(logits, ref_logits, atol=3e-2, rtol=0), "logits mismatch"

    print("KERNEL_OK")
</pallas_src>

<mosaic_0001>
module attributes {stable_mosaic.version = 11 : i64} {
  func.func @_mlp_kernel(%arg0: i32, %arg1: memref<16x32xbf16, #tpu.memory_space<vmem>>, %arg2: memref<32x64xbf16, #tpu.memory_space<vmem>>, %arg3: memref<1x64xf32, #tpu.memory_space<vmem>>, %arg4: memref<64x64xbf16, #tpu.memory_space<vmem>>, %arg5: memref<1x64xf32, #tpu.memory_space<vmem>>, %arg6: memref<64x32xbf16, #tpu.memory_space<vmem>>, %arg7: memref<1x32xf32, #tpu.memory_space<vmem>>, %arg8: memref<32x32xbf16, #tpu.memory_space<vmem>>, %arg9: memref<1x32xf32, #tpu.memory_space<vmem>>, %arg10: memref<32x128xbf16, #tpu.memory_space<vmem>>, %arg11: memref<1x128xf32, #tpu.memory_space<vmem>>, %arg12: memref<16x128xf32, #tpu.memory_space<vmem>>) attributes {dimension_semantics = [#tpu.dimension_semantics<parallel>], iteration_bounds = array<i64: 1>, scalar_prefetch = 0 : i64, scratch_operands = 0 : i64, tpu.core_type = #tpu.core_type<tc>, window_params = [{transform_indices = @transform_0, window_bounds = array<i64: 16, 32>}, {pipeline_mode = #tpu.pipeline_mode<synchronous>, transform_indices = @transform_1, window_bounds = array<i64: 32, 64>}, {pipeline_mode = #tpu.pipeline_mode<synchronous>, transform_indices = @transform_2, window_bounds = array<i64: 1, 64>}, {pipeline_mode = #tpu.pipeline_mode<synchronous>, transform_indices = @transform_3, window_bounds = array<i64: 64, 64>}, {pipeline_mode = #tpu.pipeline_mode<synchronous>, transform_indices = @transform_4, window_bounds = array<i64: 1, 64>}, {pipeline_mode = #tpu.pipeline_mode<synchronous>, transform_indices = @transform_5, window_bounds = array<i64: 64, 32>}, {pipeline_mode = #tpu.pipeline_mode<synchronous>, transform_indices = @transform_6, window_bounds = array<i64: 1, 32>}, {pipeline_mode = #tpu.pipeline_mode<synchronous>, transform_indices = @transform_7, window_bounds = array<i64: 32, 32>}, {pipeline_mode = #tpu.pipeline_mode<synchronous>, transform_indices = @transform_8, window_bounds = array<i64: 1, 32>}, {pipeline_mode = #tpu.pipeline_mode<synchronous>, transform_indices = @transform_9, window_bounds = array<i64: 32, 128>}, {pipeline_mode = #tpu.pipeline_mode<synchronous>, transform_indices = @transform_10, window_bounds = array<i64: 1, 128>}, {transform_indices = @transform_11, window_bounds = array<i64: 16, 128>}]} {
    %c0 = arith.constant 0 : index
    %c0_0 = arith.constant 0 : index
    %0 = vector.load %arg1[%c0, %c0_0] : memref<16x32xbf16, #tpu.memory_space<vmem>>, vector<16x32xbf16>
    %c0_1 = arith.constant 0 : index
    %c0_2 = arith.constant 0 : index
    %1 = vector.load %arg2[%c0_1, %c0_2] : memref<32x64xbf16, #tpu.memory_space<vmem>>, vector<32x64xbf16>
    %cst = arith.constant dense<0.000000e+00> : vector<16x64xf32>
    %2 = tpu.matmul %0, %1, %cst {dimension_numbers = #tpu.dot_dimension_numbers<[1], [0], [0], [1], [0, 0, 1, 1], [], []>} : vector<16x32xbf16>, vector<32x64xbf16>, vector<16x64xf32> -> vector<16x64xf32>
    %c0_3 = arith.constant 0 : index
    %c0_4 = arith.constant 0 : index
    %3 = vector.load %arg3[%c0_3, %c0_4] : memref<1x64xf32, #tpu.memory_space<vmem>>, vector<1x64xf32>
    %4 = vector.broadcast %3 : vector<1x64xf32> to vector<16x64xf32>
    %5 = arith.addf %2, %4 : vector<16x64xf32>
    %cst_5 = arith.constant 0.000000e+00 : f32
    %6 = vector.broadcast %cst_5 : f32 to vector<16x64xf32>
    %7 = arith.maximumf %5, %6 : vector<16x64xf32>
    %8 = arith.truncf %7 : vector<16x64xf32> to vector<16x64xbf16>
    %c0_6 = arith.constant 0 : index
    %c0_7 = arith.constant 0 : index
    %9 = vector.load %arg4[%c0_6, %c0_7] : memref<64x64xbf16, #tpu.memory_space<vmem>>, vector<64x64xbf16>
    %cst_8 = arith.constant dense<0.000000e+00> : vector<16x64xf32>
    %10 = tpu.matmul %8, %9, %cst_8 {dimension_numbers = #tpu.dot_dimension_numbers<[1], [0], [0], [1], [0, 0, 1, 1], [], []>} : vector<16x64xbf16>, vector<64x64xbf16>, vector<16x64xf32> -> vector<16x64xf32>
    %c0_9 = arith.constant 0 : index
    %c0_10 = arith.constant 0 : index
    %11 = vector.load %arg5[%c0_9, %c0_10] : memref<1x64xf32, #tpu.memory_space<vmem>>, vector<1x64xf32>
    %12 = vector.broadcast %11 : vector<1x64xf32> to vector<16x64xf32>
    %13 = arith.addf %10, %12 : vector<16x64xf32>
    %cst_11 = arith.constant 0.000000e+00 : f32
    %14 = vector.broadcast %cst_11 : f32 to vector<16x64xf32>
    %15 = arith.maximumf %13, %14 : vector<16x64xf32>
    %16 = arith.truncf %15 : vector<16x64xf32> to vector<16x64xbf16>
    %c0_12 = arith.constant 0 : index
    %c0_13 = arith.constant 0 : index
    %17 = vector.load %arg6[%c0_12, %c0_13] : memref<64x32xbf16, #tpu.memory_space<vmem>>, vector<64x32xbf16>
    %cst_14 = arith.constant dense<0.000000e+00> : vector<16x32xf32>
    %18 = tpu.matmul %16, %17, %cst_14 {dimension_numbers = #tpu.dot_dimension_numbers<[1], [0], [0], [1], [0, 0, 1, 1], [], []>} : vector<16x64xbf16>, vector<64x32xbf16>, vector<16x32xf32> -> vector<16x32xf32>
    %c0_15 = arith.constant 0 : index
    %c0_16 = arith.constant 0 : index
    %19 = vector.load %arg7[%c0_15, %c0_16] : memref<1x32xf32, #tpu.memory_space<vmem>>, vector<1x32xf32>
    %20 = vector.broadcast %19 : vector<1x32xf32> to vector<16x32xf32>
    %21 = arith.addf %18, %20 : vector<16x32xf32>
    %cst_17 = arith.constant 0.000000e+00 : f32
    %22 = vector.broadcast %cst_17 : f32 to vector<16x32xf32>
    %23 = arith.maximumf %21, %22 : vector<16x32xf32>
    %24 = arith.truncf %23 : vector<16x32xf32> to vector<16x32xbf16>
    %c0_18 = arith.constant 0 : index
    %c0_19 = arith.constant 0 : index
    %25 = vector.load %arg8[%c0_18, %c0_19] : memref<32x32xbf16, #tpu.memory_space<vmem>>, vector<32x32xbf16>
    %cst_20 = arith.constant dense<0.000000e+00> : vector<16x32xf32>
    %26 = tpu.matmul %24, %25, %cst_20 {dimension_numbers = #tpu.dot_dimension_numbers<[1], [0], [0], [1], [0, 0, 1, 1], [], []>} : vector<16x32xbf16>, vector<32x32xbf16>, vector<16x32xf32> -> vector<16x32xf32>
    %c0_21 = arith.constant 0 : index
    %c0_22 = arith.constant 0 : index
    %27 = vector.load %arg9[%c0_21, %c0_22] : memref<1x32xf32, #tpu.memory_space<vmem>>, vector<1x32xf32>
    %28 = vector.broadcast %27 : vector<1x32xf32> to vector<16x32xf32>
    %29 = arith.addf %26, %28 : vector<16x32xf32>
    %cst_23 = arith.constant 0.000000e+00 : f32
    %30 = vector.broadcast %cst_23 : f32 to vector<16x32xf32>
    %31 = arith.maximumf %29, %30 : vector<16x32xf32>
    %32 = arith.truncf %31 : vector<16x32xf32> to vector<16x32xbf16>
    %c0_24 = arith.constant 0 : index
    %c0_25 = arith.constant 0 : index
    %33 = vector.load %arg10[%c0_24, %c0_25] : memref<32x128xbf16, #tpu.memory_space<vmem>>, vector<32x128xbf16>
    %cst_26 = arith.constant dense<0.000000e+00> : vector<16x128xf32>
    %34 = tpu.matmul %32, %33, %cst_26 {dimension_numbers = #tpu.dot_dimension_numbers<[1], [0], [0], [1], [0, 0, 1, 1], [], []>} : vector<16x32xbf16>, vector<32x128xbf16>, vector<16x128xf32> -> vector<16x128xf32>
    %c0_27 = arith.constant 0 : index
    %c0_28 = arith.constant 0 : index
    %35 = vector.load %arg11[%c0_27, %c0_28] : memref<1x128xf32, #tpu.memory_space<vmem>>, vector<1x128xf32>
    %36 = vector.broadcast %35 : vector<1x128xf32> to vector<16x128xf32>
    %37 = arith.addf %34, %36 : vector<16x128xf32>
    %cst_29 = arith.constant dense<0xFF800000> : vector<16xf32>
    %38 = vector.multi_reduction <maximumf>, %37, %cst_29 [1] : vector<16x128xf32> to vector<16xf32>
    %39 = vector.shape_cast %38 : vector<16xf32> to vector<16x1xf32>
    %40 = vector.broadcast %39 : vector<16x1xf32> to vector<16x128xf32>
    %41 = arith.subf %37, %40 : vector<16x128xf32>
    %42 = math.exp %41 : vector<16x128xf32>
    %cst_30 = arith.constant dense<0.000000e+00> : vector<16xf32>
    %43 = vector.multi_reduction <add>, %42, %cst_30 [1] : vector<16x128xf32> to vector<16xf32>
    %44 = vector.shape_cast %43 : vector<16xf32> to vector<16x1xf32>
    %45 = tpu.reciprocal %44 {approx = true} : vector<16x1xf32> -> vector<16x1xf32>
    %46 = vector.broadcast %45 : vector<16x1xf32> to vector<16x128xf32>
    %47 = arith.mulf %42, %46 : vector<16x128xf32>
    %c0_31 = arith.constant 0 : index
    %c0_32 = arith.constant 0 : index
    %48 = vector.load %arg12[%c0_31, %c0_32] : memref<16x128xf32, #tpu.memory_space<vmem>>, vector<16x128xf32>
    tpu.vector_store %arg12[%c0_31, %c0_32], %47 {strides = array<i32>} : memref<16x128xf32, #tpu.memory_space<vmem>>, vector<16x128xf32>,
    return
  }
  func.func @transform_0(%arg0: i32) -> (i32, i32) {
    %c0_i32 = arith.constant 0 : i32
    %c0_i32_0 = arith.constant 0 : i32
    return %arg0, %c0_i32 : i32, i32
  }
  func.func @transform_1(%arg0: i32) -> (i32, i32) {
    %c0_i32 = arith.constant 0 : i32
    %c0_i32_0 = arith.constant 0 : i32
    %c0_i32_1 = arith.constant 0 : i32
    return %c0_i32, %c0_i32_0 : i32, i32
  }
  func.func @transform_2(%arg0: i32) -> (i32, i32) {
    %c0_i32 = arith.constant 0 : i32
    %c0_i32_0 = arith.constant 0 : i32
    %c0_i32_1 = arith.constant 0 : i32
    return %c0_i32, %c0_i32_0 : i32, i32
  }
  func.func @transform_3(%arg0: i32) -> (i32, i32) {
    %c0_i32 = arith.constant 0 : i32
    %c0_i32_0 = arith.constant 0 : i32
    %c0_i32_1 = arith.constant 0 : i32
    return %c0_i32, %c0_i32_0 : i32, i32
  }
  func.func @transform_4(%arg0: i32) -> (i32, i32) {
    %c0_i32 = arith.constant 0 : i32
    %c0_i32_0 = arith.constant 0 : i32
    %c0_i32_1 = arith.constant 0 : i32
    return %c0_i32, %c0_i32_0 : i32, i32
  }
  func.func @transform_5(%arg0: i32) -> (i32, i32) {
    %c0_i32 = arith.constant 0 : i32
    %c0_i32_0 = arith.constant 0 : i32
    %c0_i32_1 = arith.constant 0 : i32
    return %c0_i32, %c0_i32_0 : i32, i32
  }
  func.func @transform_6(%arg0: i32) -> (i32, i32) {
    %c0_i32 = arith.constant 0 : i32
    %c0_i32_0 = arith.constant 0 : i32
    %c0_i32_1 = arith.constant 0 : i32
    return %c0_i32, %c0_i32_0 : i32, i32
  }
  func.func @transform_7(%arg0: i32) -> (i32, i32) {
    %c0_i32 = arith.constant 0 : i32
    %c0_i32_0 = arith.constant 0 : i32
    %c0_i32_1 = arith.constant 0 : i32
    return %c0_i32, %c0_i32_0 : i32, i32
  }
  func.func @transform_8(%arg0: i32) -> (i32, i32) {
    %c0_i32 = arith.constant 0 : i32
    %c0_i32_0 = arith.constant 0 : i32
    %c0_i32_1 = arith.constant 0 : i32
    return %c0_i32, %c0_i32_0 : i32, i32
  }
  func.func @transform_9(%arg0: i32) -> (i32, i32) {
    %c0_i32 = arith.constant 0 : i32
    %c0_i32_0 = arith.constant 0 : i32
    %c0_i32_1 = arith.constant 0 : i32
    return %c0_i32, %c0_i32_0 : i32, i32
  }
  func.func @transform_10(%arg0: i32) -> (i32, i32) {
    %c0_i32 = arith.constant 0 : i32
    %c0_i32_0 = arith.constant 0 : i32
    %c0_i32_1 = arith.constant 0 : i32
    return %c0_i32, %c0_i32_0 : i32, i32
  }
  func.func @transform_11(%arg0: i32) -> (i32, i32) {
    %c0_i32 = arith.constant 0 : i32
    %c0_i32_0 = arith.constant 0 : i32
    return %arg0, %c0_i32 : i32, i32
  }
}

</mosaic_0001>

<llo_original>
// kernel: tpu_custom_call.1
$region0: #{tpu_custom_call.1}
  #allocation0 [shape = 'u32[]', space=smem, size = 0x4, offset = 0x4, fixed_abs, tag = 'smem constant byte address 0x4 - core index']
  #allocation1 [shape = 'u32[144,128]{1,0:T(1,128)}', space=vmem, size = 0x12000, scoped, tag = 'internal scratch']
  %s0 = inlined_call_operand.hbm [shape: bf16[16,32], index: 0, kind: input, shape index: {}]
  %s1 = inlined_call_operand.vmem [shape: bf16[32,64], index: 1, kind: input, shape index: {}]
  %s2 = inlined_call_operand.vmem [shape: f32[1,64], index: 2, kind: input, shape index: {}]
  %s3 = inlined_call_operand.vmem [shape: bf16[64,64], index: 3, kind: input, shape index: {}]
  %s4 = inlined_call_operand.vmem [shape: f32[1,64], index: 4, kind: input, shape index: {}]
  %s5 = inlined_call_operand.vmem [shape: bf16[64,32], index: 5, kind: input, shape index: {}]
  %s6 = inlined_call_operand.hbm [shape: f32[1,32], index: 6, kind: input, shape index: {}]
  %s7 = inlined_call_operand.hbm [shape: bf16[32,32], index: 7, kind: input, shape index: {}]
  %s8 = inlined_call_operand.hbm [shape: f32[1,32], index: 8, kind: input, shape index: {}]
  %s9 = inlined_call_operand.vmem [shape: bf16[32,128], index: 9, kind: input, shape index: {}]
  %s10 = inlined_call_operand.vmem [shape: f32[1,128], index: 10, kind: input, shape index: {}]
  %s11 = inlined_call_operand.hbm [shape: f32[16,128], index: 11, kind: output, shape index: {}]
  %s12 = sld [smem:[#allocation0]]
  $region70: #{tpu_custom_call.1} parent=0
    _
  %s14 = ssub.s32 1, %s12
  %s15 = scalar_select 0, %s14, %s12
  $region1: #{tpu_custom_call.1} parent=0
    #allocation2 [shape = 'u8[4096]{0}', space=vmem, size = 0x1000, scoped, tag = 'input window, operand 0, single buffered']
    #allocation3 [shape = 's32[1]{0}', space=sflag, size = 0x4, scoped, tag = 'scoped memory for tpu_custom_call.1']
    #allocation4 [shape = 's32[1]{0}', space=sflag, size = 0x4, scoped, tag = 'scoped memory for tpu_custom_call.1']
    #allocation5 [shape = 'u8[512]{0}', space=vmem, size = 0x400, scoped, tag = 'input window, operand 6, single buffered']
    #allocation6 [shape = 's32[1]{0}', space=sflag, size = 0x4, scoped, tag = 'scoped memory for tpu_custom_call.1']
    #allocation7 [shape = 'u8[8192]{0}', space=vmem, size = 0x2000, scoped, tag = 'input window, operand 7, single buffered']
    #allocation8 [shape = 'u8[512]{0}', space=vmem, size = 0x400, scoped, tag = 'input window, operand 8, single buffered']
    #allocation9 [shape = 's32[1]{0}', space=sflag, size = 0x4, scoped, tag = 'scoped memory for tpu_custom_call.1']
    #allocation10 [shape = 'u8[8192]{0}', space=vmem, size = 0x2000, scoped, tag = 'output window, operand 0, single buffered']
    %16 = vsyncpa [#allocation3], 0
    %17 = vsyncpa [#allocation6], 0
    %18 = vsyncpa [#allocation9], 0
    %19 = vsyncpa [#allocation4], 0
    // Predicated region
    $region2: #{tpu_custom_call.1} parent=1 // pred_check
      _
    $region3: #{tpu_custom_call.1} parent=1 // pred_check_branch
      %21 = sbr.rel (0) target = $region5
    $region4: #{tpu_custom_call.1} parent=1 // pred_region
      %s23 = ssub.s32 128, 128
      %24 = vsyncadd [#allocation3], %s23
      %s25 = sshll.u32 [#allocation2], 4
      %s26 = int_to_ptr.vmem [resolvable:$true] %s25
      %31 = dma.hbm_to_vmem [thread:$0]  %s0, 128, %s26, [#allocation3], 64, 64, 4
    $region5: #{tpu_custom_call.1} parent=1 // pred_fallthru
      _
    // Predicated region
    $region6: #{tpu_custom_call.1} parent=1 // pred_check
      _
    $region7: #{tpu_custom_call.1} parent=1 // pred_check_branch
      %33 = sbr.rel (0) target = $region9
    $region8: #{tpu_custom_call.1} parent=1 // pred_region
      _
    $region9: #{tpu_custom_call.1} parent=1 // pred_fallthru
      _
    // Predicated region
    $region10: #{tpu_custom_call.1} parent=1 // pred_check
      _
    $region11: #{tpu_custom_call.1} parent=1 // pred_check_branch
      %35 = sbr.rel (0) target = $region13
    $region12: #{tpu_custom_call.1} parent=1 // pred_region
      _
    $region13: #{tpu_custom_call.1} parent=1 // pred_fallthru
      _
    // Predicated region
    $region14: #{tpu_custom_call.1} parent=1 // pred_check
      _
    $region15: #{tpu_custom_call.1} parent=1 // pred_check_branch
      %37 = sbr.rel (0) target = $region17
    $region16: #{tpu_custom_call.1} parent=1 // pred_region
      _
    $region17: #{tpu_custom_call.1} parent=1 // pred_fallthru
      _
    // Predicated region
    $region18: #{tpu_custom_call.1} parent=1 // pred_check
      _
    $region19: #{tpu_custom_call.1} parent=1 // pred_check_branch
      %39 = sbr.rel (0) target = $region21
    $region20: #{tpu_custom_call.1} parent=1 // pred_region
      _
    $region21: #{tpu_custom_call.1} parent=1 // pred_fallthru
      _
    // Predicated region
    $region22: #{tpu_custom_call.1} parent=1 // pred_check
      _
    $region23: #{tpu_custom_call.1} parent=1 // pred_check_branch
      %41 = sbr.rel (0) target = $region25
    $region24: #{tpu_custom_call.1} parent=1 // pred_region
      _
    $region25: #{tpu_custom_call.1} parent=1 // pred_fallthru
      _
    // Predicated region
    $region26: #{tpu_custom_call.1} parent=1 // pred_check
      _
    $region27: #{tpu_custom_call.1} parent=1 // pred_check_branch
      %43 = sbr.rel (0) target = $region29
    $region28: #{tpu_custom_call.1} parent=1 // pred_region
      %s45 = ssub.s32 16, 16
      %46 = vsyncadd [#allocation6], %s45
      %s48 = sshll.u32 [#allocation5], 4
      %s49 = int_to_ptr.vmem [resolvable:$true] %s48
      %51 = dma.hbm_to_vmem [thread:$0]  %s6, 16, %s49, [#allocation6]
    $region29: #{tpu_custom_call.1} parent=1 // pred_fallthru
      _
    // Predicated region
    $region30: #{tpu_custom_call.1} parent=1 // pred_check
      _
    $region31: #{tpu_custom_call.1} parent=1 // pred_check_branch
      %53 = sbr.rel (0) target = $region33
    $region32: #{tpu_custom_call.1} parent=1 // pred_region
      %s55 = ssub.s32 256, 256
      %56 = vsyncadd [#allocation6], %s55
      %s57 = sshll.u32 [#allocation7], 4
      %s58 = int_to_ptr.vmem [resolvable:$true] %s57
      %63 = dma.hbm_to_vmem [thread:$0]  %s7, 256, %s58, [#allocation6], 64, 64, 4
    $region33: #{tpu_custom_call.1} parent=1 // pred_fallthru
      _
    // Predicated region
    $region34: #{tpu_custom_call.1} parent=1 // pred_check
      _
    $region35: #{tpu_custom_call.1} parent=1 // pred_check_branch
      %65 = sbr.rel (0) target = $region37
    $region36: #{tpu_custom_call.1} parent=1 // pred_region
      %s67 = ssub.s32 16, 16
      %68 = vsyncadd [#allocation9], %s67
      %s70 = sshll.u32 [#allocation8], 4
      %s71 = int_to_ptr.vmem [resolvable:$true] %s70
      %73 = dma.hbm_to_vmem [thread:$0]  %s8, 16, %s71, [#allocation9]
    $region37: #{tpu_custom_call.1} parent=1 // pred_fallthru
      _
    // Predicated region
    $region38: #{tpu_custom_call.1} parent=1 // pred_check
      _
    $region39: #{tpu_custom_call.1} parent=1 // pred_check_branch
      %75 = sbr.rel (0) target = $region41
    $region40: #{tpu_custom_call.1} parent=1 // pred_region
      _
    $region41: #{tpu_custom_call.1} parent=1 // pred_fallthru
      _
    // Predicated region
    $region42: #{tpu_custom_call.1} parent=1 // pred_check
      _
    $region43: #{tpu_custom_call.1} parent=1 // pred_check_branch
      %77 = sbr.rel (0) target = $region45
    $region44: #{tpu_custom_call.1} parent=1 // pred_region
      _
    $region45: #{tpu_custom_call.1} parent=1 // pred_fallthru
      _
    // Predicated region
    $region46: #{tpu_custom_call.1} parent=1 // pred_check
      _
    $region47: #{tpu_custom_call.1} parent=1 // pred_check_branch
      %79 = sbr.rel (0) target = $region49
    $region48: #{tpu_custom_call.1} parent=1 // pred_region
      %80 = dma.done [#allocation3], 128
    $region49: #{tpu_custom_call.1} parent=1 // pred_fallthru
      _
    // Predicated region
    $region50: #{tpu_custom_call.1} parent=1 // pred_check
      _
    $region51: #{tpu_custom_call.1} parent=1 // pred_check_branch
      %82 = sbr.rel (0) target = $region53
    $region52: #{tpu_custom_call.1} parent=1 // pred_region
      %83 = dma.done [#allocation6], 16
    $region53: #{tpu_custom_call.1} parent=1 // pred_fallthru
      _
    // Predicated region
    $region54: #{tpu_custom_call.1} parent=1 // pred_check
      _
    $region55: #{tpu_custom_call.1} parent=1 // pred_check_branch
      %85 = sbr.rel (0) target = $region57
    $region56: #{tpu_custom_call.1} parent=1 // pred_region
      %86 = dma.done [#allocation6], 256
    $region57: #{tpu_custom_call.1} parent=1 // pred_fallthru
      _
    // Predicated region
    $region58: #{tpu_custom_call.1} parent=1 // pred_check
      _
    $region59: #{tpu_custom_call.1} parent=1 // pred_check_branch
      %88 = sbr.rel (0) target = $region61
    $region60: #{tpu_custom_call.1} parent=1 // pred_region
      %89 = dma.done [#allocation9], 16
    $region61: #{tpu_custom_call.1} parent=1 // pred_fallthru
      _
    %v91 = vld [vmem:[#allocation2] sm:$0xf]
    %v92 = vld [vmem:[#allocation2 + $0x4] sm:$0xf]
    %v93 = vld [vmem:[%s1] sm:$0xf]
    %v94 = vld [vmem:[%s1 + $0x4] sm:$0xf]
    %v95 = vld [vmem:[%s1 + $0x8] sm:$0xf]
    %v96 = vld [vmem:[%s1 + $0xc] sm:$0xf]
    %v97 = vld [vmem:[%s2] sm:$0x1]
    %v99 = vlaneseq
    %v100 = vshrl.u32 %v99, 7
    %v101 = vsub.s32 0, %v100
    %v102 = vrot.slane %v97, %v101
    %v106 = vunpack.c.l.b16 %v91
    %v107 = vunpack.c.l.b16 %v92
    %v108 = vpack.c.b16 %v107, %v106
    %v113 = vunpack.c.l.b16 %v93
    %v114 = vunpack.c.l.b16 %v94
    %v115 = vunpack.c.l.b16 %v95
    %v116 = vunpack.c.l.b16 %v96
    %v117 = vpack.c.b16 %v114, %v113
    %v118 = vpack.c.b16 %v116, %v115
    %vm121 = vcmask 261120
    %v123 = vsel %vm121, %v108, 0
    %125 = vmatprep.subr.bf16.mxu0 0
    %126 = vmatpush1.bf16.msra.mxu0 %v117
    %127 = vmatprep.subr.bf16.mxu0 0
    %128 = vmatpush1.bf16.msra.mxu0 %v118
    %129 = vmatprep.subr.bf16.mxu0 0
    %130 = vmatpush1.bf16.msra.mxu0 0
    %131 = vmatprep.subr.bf16.mxu0 0
    %132 = vmatpush1.bf16.msra.mxu0 0
    %133 = vmatprep.subr.bf16.mxu0 0
    %134 = vmatpush1.bf16.msra.mxu0 0
    %135 = vmatprep.subr.bf16.mxu0 0
    %136 = vmatpush1.bf16.msra.mxu0 0
    %137 = vmatprep.subr.bf16.mxu0 0
    %138 = vmatpush1.bf16.msra.mxu0 0
    %139 = vmatprep.subr.bf16.mxu0 0
    %140 = vmatpush1.bf16.msra.mxu0 0
    %141 = vmatprep.subr.bf16.mxu0 0
    %142 = vmatpush1.bf16.msra.mxu0 0
    %143 = vmatprep.subr.bf16.mxu0 0
    %144 = vmatpush1.bf16.msra.mxu0 0
    %145 = vmatprep.subr.bf16.mxu0 0
    %146 = vmatpush1.bf16.msra.mxu0 0
    %147 = vmatprep.subr.bf16.mxu0 0
    %148 = vmatpush1.bf16.msra.mxu0 0
    %149 = vmatprep.subr.bf16.mxu0 0
    %150 = vmatpush1.bf16.msra.mxu0 0
    %151 = vmatprep.subr.bf16.mxu0 0
    %152 = vmatpush1.bf16.msra.mxu0 0
    %153 = vmatprep.subr.bf16.mxu0 0
    %154 = vmatpush1.bf16.msra.mxu0 0
    %155 = vmatprep.subr.bf16.mxu0 0
    %156 = vmatpush1.bf16.msra.mxu0 0
    %157 = vmatprep.mubr.bf16.mxu0 0
    %158 = vmatmul.mubr.bf16.gmra.mrb[0].mxu0 %v123
    %v159 = vpop.f32.mrb[0].mxu0
    %v160 = vadd.f32 %v102, %v159
    %v161 = vpop.f32.mrb[0].mxu0
    %v162 = vpop.f32.mrb[0].mxu0
    %v163 = vadd.f32 %v102, %v162
    %v164 = vpop.f32.mrb[0].mxu0
    %165 = vdwg.mxu0
    %v166 = vmax.f32 %v160, 0.0
    %v167 = vmax.f32 %v163, 0.0
    %v168 = vpack.c.bf16 %v167, %v166
    %v169 = vld [vmem:[%s3] sm:$0xf]
    %v170 = vld [vmem:[%s3 + $0x4] sm:$0xf]
    %v171 = vld [vmem:[%s3 + $0x8] sm:$0xf]
    %v172 = vld [vmem:[%s3 + $0xc] sm:$0xf]
    %v173 = vld [vmem:[%s3 + $0x10] sm:$0xf]
    %v174 = vld [vmem:[%s3 + $0x14] sm:$0xf]
    %v175 = vld [vmem:[%s3 + $0x18] sm:$0xf]
    %v176 = vld [vmem:[%s3 + $0x1c] sm:$0xf]
    %v177 = vld [vmem:[%s4] sm:$0x1]
    %v179 = vlaneseq
    %v180 = vshrl.u32 %v179, 7
    %v181 = vsub.s32 0, %v180
    %v182 = vrot.slane %v177, %v181
    %v192 = vunpack.c.l.b16 %v169
    %v193 = vunpack.c.l.b16 %v170
    %v194 = vunpack.c.l.b16 %v171
    %v195 = vunpack.c.l.b16 %v172
    %v196 = vunpack.c.l.b16 %v173
    %v197 = vunpack.c.l.b16 %v174
    %v198 = vunpack.c.l.b16 %v175
    %v199 = vunpack.c.l.b16 %v176
    %v200 = vpack.c.b16 %v193, %v192
    %v201 = vpack.c.b16 %v195, %v194
    %v202 = vpack.c.b16 %v197, %v196
    %v203 = vpack.c.b16 %v199, %v198
    %vm208 = vcmask 523264
    %v210 = vsel %vm208, %v168, 0
    %212 = vmatprep.subr.bf16.mxu0 0
    %213 = vmatpush1.bf16.msra.mxu0 %v200
    %214 = vmatprep.subr.bf16.mxu0 0
    %215 = vmatpush1.bf16.msra.mxu0 %v201
    %216 = vmatprep.subr.bf16.mxu0 0
    %217 = vmatpush1.bf16.msra.mxu0 %v202
    %218 = vmatprep.subr.bf16.mxu0 0
    %219 = vmatpush1.bf16.msra.mxu0 %v203
    %220 = vmatprep.subr.bf16.mxu0 0
    %221 = vmatpush1.bf16.msra.mxu0 0
    %222 = vmatprep.subr.bf16.mxu0 0
    %223 = vmatpush1.bf16.msra.mxu0 0
    %224 = vmatprep.subr.bf16.mxu0 0
    %225 = vmatpush1.bf16.msra.mxu0 0
    %226 = vmatprep.subr.bf16.mxu0 0
    %227 = vmatpush1.bf16.msra.mxu0 0
    %228 = vmatprep.subr.bf16.mxu0 0
    %229 = vmatpush1.bf16.msra.mxu0 0
    %230 = vmatprep.subr.bf16.mxu0 0
    %231 = vmatpush1.bf16.msra.mxu0 0
    %232 = vmatprep.subr.bf16.mxu0 0
    %233 = vmatpush1.bf16.msra.mxu0 0
    %234 = vmatprep.subr.bf16.mxu0 0
    %235 = vmatpush1.bf16.msra.mxu0 0
    %236 = vmatprep.subr.bf16.mxu0 0
    %237 = vmatpush1.bf16.msra.mxu0 0
    %238 = vmatprep.subr.bf16.mxu0 0
    %239 = vmatpush1.bf16.msra.mxu0 0
    %240 = vmatprep.subr.bf16.mxu0 0
    %241 = vmatpush1.bf16.msra.mxu0 0
    %242 = vmatprep.subr.bf16.mxu0 0
    %243 = vmatpush1.bf16.msra.mxu0 0
    %244 = vmatprep.mubr.bf16.mxu0 0
    %245 = vmatmul.mubr.bf16.gmra.mrb[0].mxu0 %v210
    %v246 = vpop.f32.mrb[0].mxu0
    %v247 = vadd.f32 %v182, %v246
    %v248 = vpop.f32.mrb[0].mxu0
    %v249 = vpop.f32.mrb[0].mxu0
    %v250 = vadd.f32 %v182, %v249
    %v251 = vpop.f32.mrb[0].mxu0
    %252 = vdwg.mxu0
    %v253 = vmax.f32 %v247, 0.0
    %v254 = vmax.f32 %v250, 0.0
    %v255 = vpack.c.bf16 %v254, %v253
    %v256 = vld [vmem:[%s5] sm:$0xf]
    %v257 = vld [vmem:[%s5 + $0x4] sm:$0xf]
    %v258 = vld [vmem:[%s5 + $0x8] sm:$0xf]
    %v259 = vld [vmem:[%s5 + $0xc] sm:$0xf]
    %v260 = vld [vmem:[%s5 + $0x10] sm:$0xf]
    %v261 = vld [vmem:[%s5 + $0x14] sm:$0xf]
    %v262 = vld [vmem:[%s5 + $0x18] sm:$0xf]
    %v263 = vld [vmem:[%s5 + $0x1c] sm:$0xf]
    %v264 = vld [vmem:[#allocation5] sm:$0x1]
    %v266 = vlaneseq
    %v267 = vshrl.u32 %v266, 7
    %v268 = vsub.s32 0, %v267
    %v269 = vrot.slane %v264, %v268
    %v279 = vunpack.c.l.b16 %v256
    %v280 = vunpack.c.l.b16 %v257
    %v281 = vunpack.c.l.b16 %v258
    %v282 = vunpack.c.l.b16 %v259
    %v283 = vunpack.c.l.b16 %v260
    %v284 = vunpack.c.l.b16 %v261
    %v285 = vunpack.c.l.b16 %v262
    %v286 = vunpack.c.l.b16 %v263
    %v287 = vpack.c.b16 %v280, %v279
    %v288 = vpack.c.b16 %v282, %v281
    %v289 = vpack.c.b16 %v284, %v283
    %v290 = vpack.c.b16 %v286, %v285
    %v296 = vsel %vm208, %v255, 0
    %298 = vmatprep.subr.bf16.mxu0 0
    %299 = vmatpush1.bf16.msra.mxu0 %v287
    %300 = vmatprep.subr.bf16.mxu0 0
    %301 = vmatpush1.bf16.msra.mxu0 %v288
    %302 = vmatprep.subr.bf16.mxu0 0
    %303 = vmatpush1.bf16.msra.mxu0 %v289
    %304 = vmatprep.subr.bf16.mxu0 0
    %305 = vmatpush1.bf16.msra.mxu0 %v290
    %306 = vmatprep.subr.bf16.mxu0 0
    %307 = vmatpush1.bf16.msra.mxu0 0
    %308 = vmatprep.subr.bf16.mxu0 0
    %309 = vmatpush1.bf16.msra.mxu0 0
    %310 = vmatprep.subr.bf16.mxu0 0
    %311 = vmatpush1.bf16.msra.mxu0 0
    %312 = vmatprep.subr.bf16.mxu0 0
    %313 = vmatpush1.bf16.msra.mxu0 0
    %314 = vmatprep.subr.bf16.mxu0 0
    %315 = vmatpush1.bf16.msra.mxu0 0
    %316 = vmatprep.subr.bf16.mxu0 0
    %317 = vmatpush1.bf16.msra.mxu0 0
    %318 = vmatprep.subr.bf16.mxu0 0
    %319 = vmatpush1.bf16.msra.mxu0 0
    %320 = vmatprep.subr.bf16.mxu0 0
    %321 = vmatpush1.bf16.msra.mxu0 0
    %322 = vmatprep.subr.bf16.mxu0 0
    %323 = vmatpush1.bf16.msra.mxu0 0
    %324 = vmatprep.subr.bf16.mxu0 0
    %325 = vmatpush1.bf16.msra.mxu0 0
    %326 = vmatprep.subr.bf16.mxu0 0
    %327 = vmatpush1.bf16.msra.mxu0 0
    %328 = vmatprep.subr.bf16.mxu0 0
    %329 = vmatpush1.bf16.msra.mxu0 0
    %330 = vmatprep.mubr.bf16.mxu0 0
    %331 = vmatmul.mubr.bf16.gmra.mrb[0].mxu0 %v296
    %v332 = vpop.f32.mrb[0].mxu0
    %v333 = vadd.f32 %v269, %v332
    %v334 = vpop.f32.mrb[0].mxu0
    %v335 = vpop.f32.mrb[0].mxu0
    %v336 = vadd.f32 %v269, %v335
    %v337 = vpop.f32.mrb[0].mxu0
    %338 = vdwg.mxu0
    %v339 = vmax.f32 %v333, 0.0
    %v340 = vmax.f32 %v336, 0.0
    %v341 = vpack.c.bf16 %v340, %v339
    %v342 = vld [vmem:[#allocation7] sm:$0xf]
    %v343 = vld [vmem:[#allocation7 + $0x4] sm:$0xf]
    %v344 = vld [vmem:[#allocation7 + $0x8] sm:$0xf]
    %v345 = vld [vmem:[#allocation7 + $0xc] sm:$0xf]
    %v346 = vld [vmem:[#allocation8] sm:$0x1]
    %v348 = vlaneseq
    %v349 = vshrl.u32 %v348, 7
    %v350 = vsub.s32 0, %v349
    %v351 = vrot.slane %v346, %v350
    %v357 = vunpack.c.l.b16 %v342
    %v358 = vunpack.c.l.b16 %v343
    %v359 = vunpack.c.l.b16 %v344
    %v360 = vunpack.c.l.b16 %v345
    %v361 = vpack.c.b16 %v358, %v357
    %v362 = vpack.c.b16 %v360, %v359
    %v366 = vsel %vm121, %v341, 0
    %368 = vmatprep.subr.bf16.mxu0 0
    %369 = vmatpush1.bf16.msra.mxu0 %v361
    %370 = vmatprep.subr.bf16.mxu0 0
    %371 = vmatpush1.bf16.msra.mxu0 %v362
    %372 = vmatprep.subr.bf16.mxu0 0
    %373 = vmatpush1.bf16.msra.mxu0 0
    %374 = vmatprep.subr.bf16.mxu0 0
    %375 = vmatpush1.bf16.msra.mxu0 0
    %376 = vmatprep.subr.bf16.mxu0 0
    %377 = vmatpush1.bf16.msra.mxu0 0
    %378 = vmatprep.subr.bf16.mxu0 0
    %379 = vmatpush1.bf16.msra.mxu0 0
    %380 = vmatprep.subr.bf16.mxu0 0
    %381 = vmatpush1.bf16.msra.mxu0 0
    %382 = vmatprep.subr.bf16.mxu0 0
    %383 = vmatpush1.bf16.msra.mxu0 0
    %384 = vmatprep.subr.bf16.mxu0 0
    %385 = vmatpush1.bf16.msra.mxu0 0
    %386 = vmatprep.subr.bf16.mxu0 0
    %387 = vmatpush1.bf16.msra.mxu0 0
    %388 = vmatprep.subr.bf16.mxu0 0
    %389 = vmatpush1.bf16.msra.mxu0 0
    %390 = vmatprep.subr.bf16.mxu0 0
    %391 = vmatpush1.bf16.msra.mxu0 0
    %392 = vmatprep.subr.bf16.mxu0 0
    %393 = vmatpush1.bf16.msra.mxu0 0
    %394 = vmatprep.subr.bf16.mxu0 0
    %395 = vmatpush1.bf16.msra.mxu0 0
    %396 = vmatprep.subr.bf16.mxu0 0
    %397 = vmatpush1.bf16.msra.mxu0 0
    %398 = vmatprep.subr.bf16.mxu0 0
    %399 = vmatpush1.bf16.msra.mxu0 0
    %400 = vmatprep.mubr.bf16.mxu0 0
    %401 = vmatmul.mubr.bf16.gmra.mrb[0].mxu0 %v366
    %v402 = vpop.f32.mrb[0].mxu0
    %v403 = vadd.f32 %v351, %v402
    %v404 = vpop.f32.mrb[0].mxu0
    %v405 = vpop.f32.mrb[0].mxu0
    %v406 = vadd.f32 %v351, %v405
    %v407 = vpop.f32.mrb[0].mxu0
    %408 = vdwg.mxu0
    %v409 = vmax.f32 %v403, 0.0
    %v410 = vmax.f32 %v406, 0.0
    %v411 = vpack.c.bf16 %v410, %v409
    %v412 = vld [vmem:[%s9] sm:$0xf]
    %v413 = vld [vmem:[%s9 + $0x4] sm:$0xf]
    %v414 = vld [vmem:[%s9 + $0x8] sm:$0xf]
    %v415 = vld [vmem:[%s9 + $0xc] sm:$0xf]
    %v416 = vld [vmem:[%s10] sm:$0x1]
    %v418 = vlaneseq
    %v419 = vshrl.u32 %v418, 7
    %v420 = vsub.s32 0, %v419
    %v421 = vrot.slane %v416, %v420
    %v427 = vunpack.c.l.b16 %v412
    %v428 = vunpack.c.l.b16 %v413
    %v429 = vunpack.c.l.b16 %v414
    %v430 = vunpack.c.l.b16 %v415
    %v431 = vpack.c.b16 %v428, %v427
    %v432 = vpack.c.b16 %v430, %v429
    %v436 = vsel %vm121, %v411, 0
    %438 = vmatprep.subr.bf16.mxu0 0
    %439 = vmatpush1.bf16.msra.mxu0 %v431
    %440 = vmatprep.subr.bf16.mxu0 0
    %441 = vmatpush1.bf16.msra.mxu0 %v432
    %442 = vmatprep.subr.bf16.mxu0 0
    %443 = vmatpush1.bf16.msra.mxu0 0
    %444 = vmatprep.subr.bf16.mxu0 0
    %445 = vmatpush1.bf16.msra.mxu0 0
    %446 = vmatprep.subr.bf16.mxu0 0
    %447 = vmatpush1.bf16.msra.mxu0 0
    %448 = vmatprep.subr.bf16.mxu0 0
    %449 = vmatpush1.bf16.msra.mxu0 0
    %450 = vmatprep.subr.bf16.mxu0 0
    %451 = vmatpush1.bf16.msra.mxu0 0
    %452 = vmatprep.subr.bf16.mxu0 0
    %453 = vmatpush1.bf16.msra.mxu0 0
    %454 = vmatprep.subr.bf16.mxu0 0
    %455 = vmatpush1.bf16.msra.mxu0 0
    %456 = vmatprep.subr.bf16.mxu0 0
    %457 = vmatpush1.bf16.msra.mxu0 0
    %458 = vmatprep.subr.bf16.mxu0 0
    %459 = vmatpush1.bf16.msra.mxu0 0
    %460 = vmatprep.subr.bf16.mxu0 0
    %461 = vmatpush1.bf16.msra.mxu0 0
    %462 = vmatprep.subr.bf16.mxu0 0
    %463 = vmatpush1.bf16.msra.mxu0 0
    %464 = vmatprep.subr.bf16.mxu0 0
    %465 = vmatpush1.bf16.msra.mxu0 0
    %466 = vmatprep.subr.bf16.mxu0 0
    %467 = vmatpush1.bf16.msra.mxu0 0
    %468 = vmatprep.subr.bf16.mxu0 0
    %469 = vmatpush1.bf16.msra.mxu0 0
    %470 = vmatprep.mubr.bf16.mxu0 0
    %471 = vmatmul.mubr.bf16.gmra.mrb[0].mxu0 %v436
    %v472 = vpop.f32.mrb[0].mxu0
    %v473 = vadd.f32 %v421, %v472
    %v474 = vpop.f32.mrb[0].mxu0
    %v475 = vpop.f32.mrb[0].mxu0
    %v476 = vadd.f32 %v421, %v475
    %v477 = vpop.f32.mrb[0].mxu0
    %478 = vdwg.mxu0
    %479 = vmax.xlane.f32.xlu0 %v473
    %v480 = vpop.xlane.xlu0 %479
    %481 = vmax.xlane.f32.xlu0 %v476
    %v482 = vpop.xlane.xlu0 %481
    %v483 = vsub.f32 %v473, %v480
    %v484 = vsub.f32 %v476, %v482
    %v485 = vmul.f32 %v483, 1.442695
    %v486 = vpow.pop %v485
    %v487 = vmul.f32 %v484, 1.442695
    %v488 = vpow.pop %v487
    %489 = vadd.xlane.f32.xlu0 %v486
    %v490 = vpop.xlane.xlu0 %489
    %491 = vadd.xlane.f32.xlu0 %v488
    %v492 = vpop.xlane.xlu0 %491
    %v493 = vrcp.pop %v490
    %v494 = vrcp.pop %v492
    %v495 = vmul.f32 %v486, %v493
    %v496 = vmul.f32 %v488, %v494
    %497 = vst [vmem:[#allocation10] sm:$0xff] %v495
    %498 = vst [vmem:[#allocation10 + $0x8] sm:$0xff] %v496
    // Predicated region
    $region62: #{tpu_custom_call.1} parent=1 // pred_check
      _
    $region63: #{tpu_custom_call.1} parent=1 // pred_check_branch
      %500 = sbr.rel (0) target = $region65
    $region64: #{tpu_custom_call.1} parent=1 // pred_region
      %s502 = ssub.s32 256, 256
      %503 = vsyncadd [#allocation4], %s502
      %s504 = sshll.u32 [#allocation10], 4
      %s505 = int_to_ptr.vmem [resolvable:$true] %s504
      %510 = dma.vmem_to_hbm [thread:$0]  %s505, 256, %s11, [#allocation4], 128, 128, 8
    $region65: #{tpu_custom_call.1} parent=1 // pred_fallthru
      _
    // Predicated region
    $region66: #{tpu_custom_call.1} parent=1 // pred_check
      _
    $region67: #{tpu_custom_call.1} parent=1 // pred_check_branch
      %512 = sbr.rel (0) target = $region69
    $region68: #{tpu_custom_call.1} parent=1 // pred_region
      %513 = dma.done [#allocation4], 256
    $region69: #{tpu_custom_call.1} parent=1 // pred_fallthru
      _
    %514 = vsyncpa [#allocation3], 1
    %515 = vsyncpa [#allocation6], 1
    %516 = vsyncpa [#allocation9], 1
    %517 = vsyncpa [#allocation4], 1

</llo_original>
